<compile_context>
chip_gen: v5e
topology: v5e:2x2
jax: 0.10.0
libtpu: 0.0.40
codegen_flags: <defaults>
</compile_context>

<pallas_src>
import math

import jax
import jax.numpy as jnp
from jax.experimental import pallas as pl
from jax.experimental.pallas import tpu as pltpu

_LANE = 128
_SUBLANE = 8


def _round_up(v, m):
    return ((v + m - 1) // m) * m


def _multi_tensorcore():
    """Heuristic: does this chip expose >1 TensorCore per device (v4/v5p megacore, v7x)?"""
    try:
        kind = jax.devices()[0].device_kind.lower()
    except Exception:  # pragma: no cover - defensive; wrong answer only costs ~0.35us
        return True
    single_tc = ("v5e", "v5 lite", "v5lite", "v6e", "v6 lite", "v6lite")
    return not any(s in kind for s in single_tc)


def _make_kernel(prescale, multi_k):
    """Build the GCN kernel body.

    prescale: apply the adjacency-diagonal scale to x before the matmul
              (valid since diag*(xW) == (diag*x)W); else scale in the f32 epilogue.
    multi_k:  the in_features axis is tiled; accumulate in an f32 VMEM scratch.
    """
    if multi_k:
        def kernel(x_ref, d_ref, w_ref, b_ref, o_ref, acc_ref):
            k = pl.program_id(2)

            @pl.when(k == 0)
            def _():
                acc_ref[...] = jnp.zeros_like(acc_ref)

            x = x_ref[...]
            if prescale:
                x = x * d_ref[...]
            acc_ref[...] += jnp.dot(x, w_ref[...],
                                    preferred_element_type=jnp.float32)

            @pl.when(k == pl.num_programs(2) - 1)
            def _():
                acc = acc_ref[...]
                if not prescale:
                    acc = d_ref[...].astype(jnp.float32) * acc
                out = acc + b_ref[...]
                o_ref[...] = jnp.maximum(out, 0.0).astype(o_ref.dtype)

        return kernel

    def kernel(x_ref, d_ref, w_ref, b_ref, o_ref):
        x = x_ref[...]
        if prescale:
            x = x * d_ref[...]
        acc = jnp.dot(x, w_ref[...], preferred_element_type=jnp.float32)
        if not prescale:
            acc = d_ref[...].astype(jnp.float32) * acc
        out = acc + b_ref[...]
        o_ref[...] = jnp.maximum(out, 0.0).astype(o_ref.dtype)

    return kernel


def _tile_bytes(tm, tn, tk, in_bytes, multi_k):
    """Approximate VMEM working set: double-buffered operand/output tiles (+ accumulator)."""
    buf = 2 * (tm * tk * in_bytes            # x tile
               + tm * _LANE * in_bytes       # (tm, 1) diag tile, lane-padded to 128
               + tk * tn * in_bytes          # weight tile
               + _SUBLANE * tn * 4           # (1, tn) bias tile, sublane-padded to 8
               + tm * tn * 4)                # output tile (f32)
    if multi_k:
        buf += tm * tn * 4                   # f32 accumulator scratch
    return buf


def _choose_tiles(M, F, Pp, in_bytes, multi_tc, budget):
    # Reduction (K) tiling only for very large in_features; TK must divide F so the
    # ragged-block garbage is never summed into the accumulator.
    TK = F
    if F > 8192:
        for cand in (2048, 1024, 512, 256, 128):
            if F % cand == 0:
                TK = cand
                break
    multi_k = TK != F

    tn_cands = [Pp] if Pp <= 2048 else [2048, 1024, 512, 256, 128]
    tm_cands = [1024, 512, 256, 128, 64, 32, 16, 8]
    m_cap = _round_up(M, _SUBLANE)

    TM, TN = tm_cands[-1], tn_cands[-1]
    found = False
    for tn in tn_cands:
        for tm in tm_cands:
            if _tile_bytes(min(tm, m_cap), tn, TK, in_bytes, multi_k) <= budget:
                TM, TN = tm, tn
                found = True
                break
        if found:
            break

    TM = min(TM, m_cap)
    # Give both TensorCores work for small problems (v7x / megacore only); on
    # single-TC chips a forced split just adds a pipeline step for nothing.
    if multi_tc and pl.cdiv(M, TM) * pl.cdiv(Pp, TN) < 2 and M > _SUBLANE:
        TM = max(_SUBLANE, _round_up(pl.cdiv(M, 2), _SUBLANE))
    return TM, TN, TK, multi_k


def graph_convolution(x, adj, weight, bias=None, *,
                      compute_dtype=jnp.bfloat16, out_dtype=jnp.float32,
                      tile_m=None, tile_n=None, tile_k=None):
    """GraphConvolution forward.

    x: (I, N, F), adj: (I, N, N), weight: (F, P), bias: (1, P)/(P,) or None.
    Returns relu(diag(adj) * (x @ weight) + bias) with shape (I, N, P).
    compute_dtype: MXU input dtype (bf16 by default, f32 accumulation always).
    """
    I, N, F = x.shape
    P = weight.shape[1]
    M = I * N
    in_bytes = jnp.dtype(compute_dtype).itemsize

    # Lane-dense output only when padding is actually needed (avoids the pad/slice
    # round-trip when P is already a multiple of 128).
    Pp = P if P % _LANE == 0 else _round_up(P, _LANE)

    prescale = F < Pp  # fewer VPU multiplies: TM*F instead of TM*Pp per tile

    TM, TN, TK, multi_k = _choose_tiles(M, F, Pp, in_bytes, _multi_tensorcore(),
                                        budget=20 * 2**20)
    if tile_m is not None:
        TM = tile_m
    if tile_n is not None:
        TN = tile_n
    if tile_k is not None:
        TK = tile_k
        multi_k = pl.cdiv(F, TK) > 1
    if multi_k and F % TK != 0:
        raise ValueError("tile_k must divide in_features when K-tiling is used")

    # Flattened (batch*node, feature) view; M is NOT padded — the ragged last block
    # is handled by masked output stores (rows are fully independent).
    x2 = x.reshape(M, F).astype(compute_dtype)
    # Adjacency diagonal extracted wrapper-side: O(I*N) data instead of DMA-ing the
    # full O(I*N^2) adjacency into VMEM just to read N values per batch element.
    diag_dtype = compute_dtype if prescale else jnp.float32
    diag = jnp.einsum("ijj->ij", adj).reshape(M, 1).astype(diag_dtype)

    w2 = weight.astype(compute_dtype)
    if bias is None:
        b2 = jnp.zeros((1, P), jnp.float32)
    else:
        b2 = bias.reshape(1, P).astype(jnp.float32)
    if Pp != P:
        w2 = jnp.pad(w2, ((0, 0), (0, Pp - P)))
        b2 = jnp.pad(b2, ((0, 0), (0, Pp - P)))

    gm = pl.cdiv(M, TM)
    gn = pl.cdiv(Pp, TN)
    gk = pl.cdiv(F, TK)

    kernel = _make_kernel(prescale, multi_k)

    cost = pl.CostEstimate(
        flops=2 * M * F * Pp,
        transcendentals=0,
        bytes_accessed=(in_bytes * (M * F + M + F * Pp) + 4 * Pp
                        + jnp.dtype(out_dtype).itemsize * M * Pp),
    )

    need = _tile_bytes(TM, TN, TK, in_bytes, multi_k)
    vmem_limit = max(32 * 2**20, 2 * need)
    vmem_limit = int(min(vmem_limit, max(56 * 2**20, need + (2 << 20))))

    if multi_k:
        grid = (gm, gn, gk)
        in_specs = [
            pl.BlockSpec((TM, TK), lambda i, j, k: (i, k)),   # x rows / K slab
            pl.BlockSpec((TM, 1), lambda i, j, k: (i, 0)),    # diag rows
            pl.BlockSpec((TK, TN), lambda i, j, k: (k, j)),   # weight slab
            pl.BlockSpec((1, TN), lambda i, j, k: (0, j)),    # bias slab
        ]
        out_specs = pl.BlockSpec((TM, TN), lambda i, j, k: (i, j))
        scratch_shapes = [pltpu.VMEM((TM, TN), jnp.float32)]
        dims = ("parallel", "parallel", "arbitrary")
    else:
        grid = (gm, gn)
        in_specs = [
            pl.BlockSpec((TM, F), lambda i, j: (i, 0)),       # x rows (full F)
            pl.BlockSpec((TM, 1), lambda i, j: (i, 0)),       # diag rows
            pl.BlockSpec((F, TN), lambda i, j: (0, j)),       # weight slab (resident over i)
            pl.BlockSpec((1, TN), lambda i, j: (0, j)),       # bias slab
        ]
        out_specs = pl.BlockSpec((TM, TN), lambda i, j: (i, j))
        scratch_shapes = []
        dims = ("parallel", "parallel")

    out = pl.pallas_call(
        kernel,
        out_shape=jax.ShapeDtypeStruct((M, Pp), out_dtype),
        grid_spec=pltpu.PrefetchScalarGridSpec(
            num_scalar_prefetch=0,
            grid=grid,
            in_specs=in_specs,
            out_specs=out_specs,
            scratch_shapes=scratch_shapes,
        ),
        compiler_params=pltpu.CompilerParams(
            dimension_semantics=dims,
            vmem_limit_bytes=vmem_limit,
        ),
        cost_estimate=cost,
    )(x2, diag, w2, b2)

    if Pp != P:
        out = out[:, :P]
    return out.reshape(I, N, P)


def _reference(x, adj, weight, bias):
    # Mirrors the PyTorch module's einsums exactly (diagonal-of-adj scaling).
    support = jnp.einsum("inf,fp->inp", x, weight)
    out = jnp.einsum("ijj,ijf->ijf", adj, support)
    out = out + bias
    return jnp.maximum(out, 0.0)


if __name__ == "__main__":
    # --- Test 1: module-sized shapes, default bf16 MXU path ------------------
    I, N, F_IN, F_OUT = 2, 16, 8, 32
    key = jax.random.PRNGKey(0)
    kx, kadj, kw, kb = jax.random.split(key, 4)

    x = jax.random.normal(kx, (I, N, F_IN), dtype=jnp.float32)
    adj = jax.random.normal(kadj, (I, N, N), dtype=jnp.float32)
    # Deterministic init matching reset_parameters(): uniform(-stdv, stdv),
    # stdv = 1/sqrt(out_features).
    stdv = 1.0 / math.sqrt(F_OUT)
    weight = jax.random.uniform(kw, (F_IN, F_OUT), minval=-stdv, maxval=stdv,
                                dtype=jnp.float32)
    bias = jax.random.uniform(kb, (1, F_OUT), minval=-stdv, maxval=stdv,
                              dtype=jnp.float32)

    ref = _reference(x, adj, weight, bias)

    out_bf16 = jax.block_until_ready(graph_convolution(x, adj, weight, bias))
    assert out_bf16.shape == (I, N, F_OUT)
    assert jnp.allclose(out_bf16, ref, atol=2e-2, rtol=2e-2), \
        "bf16-MXU path mismatch vs reference"

    out_f32 = jax.block_until_ready(
        graph_convolution(x, adj, weight, bias, compute_dtype=jnp.float32))
    assert jnp.allclose(out_f32, ref, atol=1e-5, rtol=1e-4), \
        "f32 path mismatch vs reference"

    # --- Test 2: exercises ragged-M last block, N tiling, K tiling (f32) -----
    I2, N2, F2, P2 = 3, 40, 256, 256
    k2 = jax.random.split(jax.random.PRNGKey(0), 4)
    xb = jax.random.normal(k2[0], (I2, N2, F2), dtype=jnp.float32)
    adjb = jax.random.normal(k2[1], (I2, N2, N2), dtype=jnp.float32)
    stdv2 = 1.0 / math.sqrt(P2)
    wb = jax.random.uniform(k2[2], (F2, P2), minval=-stdv2, maxval=stdv2,
                            dtype=jnp.float32)
    bb = jax.random.uniform(k2[3], (1, P2), minval=-stdv2, maxval=stdv2,
                            dtype=jnp.float32)

    out2 = jax.block_until_ready(
        graph_convolution(xb, adjb, wb, bb, compute_dtype=jnp.float32,
                          tile_m=64, tile_n=128, tile_k=128))
    ref2 = _reference(xb, adjb, wb, bb)
    assert out2.shape == (I2, N2, P2)
    assert jnp.allclose(out2, ref2, atol=1e-4, rtol=1e-4), \
        "tiled (ragged-M / N / K) path mismatch vs reference"

    print("KERNEL_OK")
</pallas_src>

<mosaic_0001>
module attributes {stable_mosaic.version = 11 : i64} {
  func.func @kernel(%arg0: i32, %arg1: i32, %arg2: memref<16x8xbf16, #tpu.memory_space<vmem>>, %arg3: memref<16x1xbf16, #tpu.memory_space<vmem>>, %arg4: memref<8x128xbf16, #tpu.memory_space<vmem>>, %arg5: memref<1x128xf32, #tpu.memory_space<vmem>>, %arg6: memref<16x128xf32, #tpu.memory_space<vmem>>) attributes {dimension_semantics = [#tpu.dimension_semantics<parallel>, #tpu.dimension_semantics<parallel>], iteration_bounds = array<i64: 2, 1>, scalar_prefetch = 0 : i64, scratch_operands = 0 : i64, tpu.core_type = #tpu.core_type<tc>, window_params = [{transform_indices = @transform_0, window_bounds = array<i64: 16, 8>}, {transform_indices = @transform_1, window_bounds = array<i64: 16, 1>}, {transform_indices = @transform_2, window_bounds = array<i64: 8, 128>}, {transform_indices = @transform_3, window_bounds = array<i64: 1, 128>}, {transform_indices = @transform_4, window_bounds = array<i64: 16, 128>}]} {
    %c0 = arith.constant 0 : index
    %c0_0 = arith.constant 0 : index
    %0 = vector.load %arg2[%c0, %c0_0] : memref<16x8xbf16, #tpu.memory_space<vmem>>, vector<16x8xbf16>
    %c0_1 = arith.constant 0 : index
    %c0_2 = arith.constant 0 : index
    %1 = vector.load %arg3[%c0_1, %c0_2] : memref<16x1xbf16, #tpu.memory_space<vmem>>, vector<16x1xbf16>
    %2 = vector.broadcast %1 : vector<16x1xbf16> to vector<16x8xbf16>
    %3 = arith.mulf %0, %2 : vector<16x8xbf16>
    %c0_3 = arith.constant 0 : index
    %c0_4 = arith.constant 0 : index
    %4 = vector.load %arg4[%c0_3, %c0_4] : memref<8x128xbf16, #tpu.memory_space<vmem>>, vector<8x128xbf16>
    %cst = arith.constant dense<0.000000e+00> : vector<16x128xf32>
    %5 = tpu.matmul %3, %4, %cst {dimension_numbers = #tpu.dot_dimension_numbers<[1], [0], [0], [1], [0, 0, 1, 1], [], []>} : vector<16x8xbf16>, vector<8x128xbf16>, vector<16x128xf32> -> vector<16x128xf32>
    %c0_5 = arith.constant 0 : index
    %c0_6 = arith.constant 0 : index
    %6 = vector.load %arg5[%c0_5, %c0_6] : memref<1x128xf32, #tpu.memory_space<vmem>>, vector<1x128xf32>
    %7 = vector.broadcast %6 : vector<1x128xf32> to vector<16x128xf32>
    %8 = arith.addf %5, %7 : vector<16x128xf32>
    %cst_7 = arith.constant 0.000000e+00 : f32
    %9 = vector.broadcast %cst_7 : f32 to vector<16x128xf32>
    %10 = arith.maximumf %8, %9 : vector<16x128xf32>
    %c0_8 = arith.constant 0 : index
    %c0_9 = arith.constant 0 : index
    %11 = vector.load %arg6[%c0_8, %c0_9] : memref<16x128xf32, #tpu.memory_space<vmem>>, vector<16x128xf32>
    tpu.vector_store %arg6[%c0_8, %c0_9], %10 {strides = array<i32>} : memref<16x128xf32, #tpu.memory_space<vmem>>, vector<16x128xf32>,
    return
  }
  func.func @transform_0(%arg0: i32, %arg1: i32) -> (i32, i32) {
    %c0_i32 = arith.constant 0 : i32
    %c0_i32_0 = arith.constant 0 : i32
    return %arg0, %c0_i32 : i32, i32
  }
  func.func @transform_1(%arg0: i32, %arg1: i32) -> (i32, i32) {
    %c0_i32 = arith.constant 0 : i32
    %c0_i32_0 = arith.constant 0 : i32
    return %arg0, %c0_i32 : i32, i32
  }
  func.func @transform_2(%arg0: i32, %arg1: i32) -> (i32, i32) {
    %c0_i32 = arith.constant 0 : i32
    %c0_i32_0 = arith.constant 0 : i32
    return %c0_i32, %arg1 : i32, i32
  }
  func.func @transform_3(%arg0: i32, %arg1: i32) -> (i32, i32) {
    %c0_i32 = arith.constant 0 : i32
    %c0_i32_0 = arith.constant 0 : i32
    return %c0_i32, %arg1 : i32, i32
  }
  func.func @transform_4(%arg0: i32, %arg1: i32) -> (i32, i32) {
    %c0_i32 = arith.constant 0 : i32
    return %arg0, %arg1 : i32, i32
  }
}

</mosaic_0001>

<llo_original>
// kernel: tpu_custom_call.1
$region0: #{tpu_custom_call.1}
  #allocation0 [shape = 'u32[]', space=smem, size = 0x4, offset = 0x4, fixed_abs, tag = 'smem constant byte address 0x4 - core index']
  #allocation1 [shape = 'u32[72,128]{1,0:T(1,128)}', space=vmem, size = 0x9000, scoped, tag = 'internal scratch']
  %s0 = inlined_call_operand.vmem [shape: bf16[32,8], index: 0, kind: input, shape index: {}]
  %s1 = inlined_call_operand.vmem [shape: bf16[32,1], index: 1, kind: input, shape index: {}]
  %s2 = inlined_call_operand.vmem [shape: bf16[8,128], index: 2, kind: input, shape index: {}]
  %s3 = inlined_call_operand.vmem [shape: f32[1,128], index: 3, kind: input, shape index: {}]
  %s4 = inlined_call_operand.hbm [shape: f32[32,128], index: 4, kind: output, shape index: {}]
  %s5 = sld [smem:[#allocation0]]
  $region49: #{tpu_custom_call.1} parent=0
    _
  %s7 = ssub.s32 1, %s5
  %s8 = scalar_select 0, %s7, %s5
  $region1: #{tpu_custom_call.1} parent=0
    #allocation2 [shape = 'u8[16384]{0}', space=vmem, size = 0x4000, scoped, tag = 'output window, operand 0']
    #allocation3 [shape = 's32[2]{0}', space=sflag, size = 0x8, scoped, tag = 'scoped memory for tpu_custom_call.1']
    %9 = vsyncpa [#allocation3], 0
    %s10 = scalar_lea.sflag [#allocation3], 1
    %11 = vsyncpa %s10, 0
    loop: start=0, step=1, limit=4
    $region2: #{tpu_custom_call.1} parent=1 // loop_pre_header
      _
    $region3: #{tpu_custom_call.1} parent=1 // loop_header
      %s13 = sphi 0, %s17
      %p14 = scmp.ge.s32.totalorder %s13, 4
      %s20 = sphi 0, %s32
      %s21 = sphi 0, %s28
      %s22 = sphi 0, %s20
      %s23 = sphi 0, %s21
      %s24 = sphi 0, %s22
      %s25 = sphi 0, %s23
      %s35 = sphi 0, %s37
      %s38 = sphi 0, %s35
      %s39 = sphi 0, %s38
      %s55 = sphi 0, %s39
      %s61 = sphi 0, %s63
      %s64 = sphi 0, %s61
      %s65 = sphi 0, %s64
      %s81 = sphi 0, %s65
      %s87 = sphi 0, %s89
      %s90 = sphi 0, %s87
      %s91 = sphi 0, %s90
      %s107 = sphi 0, %s91
      %s113 = sphi 0, %s115
      %s116 = sphi 0, %s113
      %s117 = sphi 0, %s116
      %s133 = sphi 0, %s117
      %s141 = sphi 0, %s143
      %s144 = sphi 0, %s141
      %s145 = sphi 0, %s144
      %s161 = sphi 0, %s145
    $region4: #{tpu_custom_call.1} parent=1 // loop_header_branch
      %16 = sbr.rel (%p14) target = $region8
    $region5: #{tpu_custom_call.1} parent=1 // loop_body
      %s18 = ssub.s32 %s13, 1
      %s19 = ssub.s32 %s13, 2
      %s26 = sadd.s32 1, %s21
      %p27 = scmp.ge.s32.totalorder %s26, 1
      %s28 = scalar_select %p27, 0, %s26
      %s29 = sadd.s32 1, %s20
      %s30 = scalar_select %p27, %s29, %s20
      %p31 = scmp.ge.s32.totalorder %s30, 2
      %s32 = scalar_select %p31, 0, %s30
      %s33 = ssub.s32 %s20, %s32
      %p34 = scmp.eq.s32.totalorder %s33, 0
      %s36 = sadd.s32 %s35, 1
      %s37 = scalar_select %p34, %s35, %s36
      %p40 = pneg %p34
      %p41 = scmp.eq.s32.totalorder %s13, 1
      %p42 = por %p40, %p41
      %p43 = scmp.ne.s32.totalorder %s35, %s38
      %p44 = scmp.eq.s32.totalorder %s13, 0
      %p45 = por %p43, %p44
      %p46 = scmp.ne.s32.totalorder %s35, %s38
      %p47 = scmp.eq.s32.totalorder %s18, 1
      %p48 = por %p46, %p47
      %p49 = scmp.ne.s32.totalorder %s38, %s39
      %p50 = scmp.eq.s32.totalorder %s18, 0
      %p51 = por %p49, %p50
      %p52 = scmp.ne.s32.totalorder %s38, %s39
      %p53 = scmp.eq.s32.totalorder %s19, 1
      %p54 = por %p52, %p53
      %p56 = scmp.ne.s32.totalorder %s39, %s55
      %p57 = scmp.eq.s32.totalorder %s19, 0
      %p58 = por %p56, %p57
      %s59 = ssub.s32 %s20, %s32
      %p60 = scmp.eq.s32.totalorder %s59, 0
      %s62 = sadd.s32 %s61, 1
      %s63 = scalar_select %p60, %s61, %s62
      %p66 = pneg %p60
      %p67 = scmp.eq.s32.totalorder %s13, 1
      %p68 = por %p66, %p67
      %p69 = scmp.ne.s32.totalorder %s61, %s64
      %p70 = scmp.eq.s32.totalorder %s13, 0
      %p71 = por %p69, %p70
      %p72 = scmp.ne.s32.totalorder %s61, %s64
      %p73 = scmp.eq.s32.totalorder %s18, 1
      %p74 = por %p72, %p73
      %p75 = scmp.ne.s32.totalorder %s64, %s65
      %p76 = scmp.eq.s32.totalorder %s18, 0
      %p77 = por %p75, %p76
      %p78 = scmp.ne.s32.totalorder %s64, %s65
      %p79 = scmp.eq.s32.totalorder %s19, 1
      %p80 = por %p78, %p79
      %p82 = scmp.ne.s32.totalorder %s65, %s81
      %p83 = scmp.eq.s32.totalorder %s19, 0
      %p84 = por %p82, %p83
      %s85 = ssub.s32 %s21, %s28
      %p86 = scmp.eq.s32.totalorder %s85, 0
      %s88 = sadd.s32 %s87, 1
      %s89 = scalar_select %p86, %s87, %s88
      %p92 = pneg %p86
      %p93 = scmp.eq.s32.totalorder %s13, 1
      %p94 = por %p92, %p93
      %p95 = scmp.ne.s32.totalorder %s87, %s90
      %p96 = scmp.eq.s32.totalorder %s13, 0
      %p97 = por %p95, %p96
      %p98 = scmp.ne.s32.totalorder %s87, %s90
      %p99 = scmp.eq.s32.totalorder %s18, 1
      %p100 = por %p98, %p99
      %p101 = scmp.ne.s32.totalorder %s90, %s91
      %p102 = scmp.eq.s32.totalorder %s18, 0
      %p103 = por %p101, %p102
      %p104 = scmp.ne.s32.totalorder %s90, %s91
      %p105 = scmp.eq.s32.totalorder %s19, 1
      %p106 = por %p104, %p105
      %p108 = scmp.ne.s32.totalorder %s91, %s107
      %p109 = scmp.eq.s32.totalorder %s19, 0
      %p110 = por %p108, %p109
      %s111 = ssub.s32 %s21, %s28
      %p112 = scmp.eq.s32.totalorder %s111, 0
      %s114 = sadd.s32 %s113, 1
      %s115 = scalar_select %p112, %s113, %s114
      %p118 = pneg %p112
      %p119 = scmp.eq.s32.totalorder %s13, 1
      %p120 = por %p118, %p119
      %p121 = scmp.ne.s32.totalorder %s113, %s116
      %p122 = scmp.eq.s32.totalorder %s13, 0
      %p123 = por %p121, %p122
      %p124 = scmp.ne.s32.totalorder %s113, %s116
      %p125 = scmp.eq.s32.totalorder %s18, 1
      %p126 = por %p124, %p125
      %p127 = scmp.ne.s32.totalorder %s116, %s117
      %p128 = scmp.eq.s32.totalorder %s18, 0
      %p129 = por %p127, %p128
      %p130 = scmp.ne.s32.totalorder %s116, %s117
      %p131 = scmp.eq.s32.totalorder %s19, 1
      %p132 = por %p130, %p131
      %p134 = scmp.ne.s32.totalorder %s117, %s133
      %p135 = scmp.eq.s32.totalorder %s19, 0
      %p136 = por %p134, %p135
      %s137 = ssub.s32 %s20, %s32
      %s138 = ssub.s32 %s21, %s28
      %s139 = sor.u32 %s137, %s138
      %p140 = scmp.eq.s32.totalorder %s139, 0
      %s142 = sadd.s32 %s141, 1
      %s143 = scalar_select %p140, %s141, %s142
      %p146 = pneg %p140
      %p147 = scmp.eq.s32.totalorder %s13, 1
      %p148 = por %p146, %p147
      %p149 = scmp.ne.s32.totalorder %s141, %s144
      %p150 = scmp.eq.s32.totalorder %s13, 0
      %p151 = por %p149, %p150
      %p152 = scmp.ne.s32.totalorder %s141, %s144
      %p153 = scmp.eq.s32.totalorder %s18, 1
      %p154 = por %p152, %p153
      %p155 = scmp.ne.s32.totalorder %s144, %s145
      %p156 = scmp.eq.s32.totalorder %s18, 0
      %p157 = por %p155, %p156
      %p158 = scmp.ne.s32.totalorder %s144, %s145
      %p159 = scmp.eq.s32.totalorder %s19, 1
      %p160 = por %p158, %p159
      %p162 = scmp.ne.s32.totalorder %s145, %s161
      %p163 = scmp.eq.s32.totalorder %s19, 0
      %p164 = por %p162, %p163
      %p165 = scmp.le.s32.totalorder 1, %s13
      %p166 = scmp.lt.s32.totalorder %s13, 3
      %p167 = pnand %p165, %p166
      %p168 = pneg %p167
      // Predicated region
      $region9: #{tpu_custom_call.1} parent=5 // pred_check
        _
      $region10: #{tpu_custom_call.1} parent=5 // pred_check_branch
        %170 = sbr.rel (%p167) target = $region12
      $region11: #{tpu_custom_call.1} parent=5 // pred_region
        %s171 = ssub.s32 %s13, 1
        // Predicated region
        $region13: #{tpu_custom_call.1} parent=11 // pred_check
          %p172 = pneg %p103
        $region14: #{tpu_custom_call.1} parent=11 // pred_check_branch
          %174 = sbr.rel (%p172) target = $region16
        $region15: #{tpu_custom_call.1} parent=11 // pred_region
          %p175 = scmp.lt.s32.totalorder %s23, 0
          %s176 = scalar_select %p175, %s23, 0
          %s177 = smul.addr %s176, 4
          %s178 = scalar_lea.vmem %s2, %s177
        $region16: #{tpu_custom_call.1} parent=11 // pred_fallthru
          _
        // Predicated region
        $region17: #{tpu_custom_call.1} parent=11 // pred_check
          %p179 = pneg %p129
        $region18: #{tpu_custom_call.1} parent=11 // pred_check_branch
          %181 = sbr.rel (%p179) target = $region20
        $region19: #{tpu_custom_call.1} parent=11 // pred_region
          %p182 = scmp.lt.s32.totalorder %s23, 0
          %s183 = scalar_select %p182, %s23, 0
          %s184 = scalar_lea.vmem %s3, %s183
        $region20: #{tpu_custom_call.1} parent=11 // pred_fallthru
          _
      $region12: #{tpu_custom_call.1} parent=5 // pred_fallthru
        _
      %p185 = scmp.lt.s32.totalorder %s13, 2
      // Predicated region
      $region21: #{tpu_custom_call.1} parent=5 // pred_check
        %p186 = pneg %p185
      $region22: #{tpu_custom_call.1} parent=5 // pred_check_branch
        %188 = sbr.rel (%p186) target = $region24
      $region23: #{tpu_custom_call.1} parent=5 // pred_region
        // Predicated region
        $region25: #{tpu_custom_call.1} parent=23 // pred_check
          %p189 = pneg %p45
        $region26: #{tpu_custom_call.1} parent=23 // pred_check_branch
          %191 = sbr.rel (%p189) target = $region28
        $region27: #{tpu_custom_call.1} parent=23 // pred_region
          %s192 = smul.u32 2, %s20
          %p193 = scmp.lt.s32.totalorder %s192, 3
          %s194 = scalar_select %p193, %s192, 3
          %s195 = smul.addr %s194, 4
          %s196 = scalar_lea.vmem %s0, %s195
          %s197 = smul.u32 2, %s20
        $region28: #{tpu_custom_call.1} parent=23 // pred_fallthru
          _
        // Predicated region
        $region29: #{tpu_custom_call.1} parent=23 // pred_check
          %p198 = pneg %p71
        $region30: #{tpu_custom_call.1} parent=23 // pred_check_branch
          %200 = sbr.rel (%p198) target = $region32
        $region31: #{tpu_custom_call.1} parent=23 // pred_region
          %s201 = smul.u32 2, %s20
          %p202 = scmp.lt.s32.totalorder %s201, 3
          %s203 = scalar_select %p202, %s201, 3
          %s204 = smul.addr %s203, 4
          %s205 = scalar_lea.vmem %s1, %s204
          %s206 = smul.u32 2, %s20
        $region32: #{tpu_custom_call.1} parent=23 // pred_fallthru
          _
      $region24: #{tpu_custom_call.1} parent=5 // pred_fallthru
        _
      %p207 = scmp.le.s32.totalorder 1, %s13
      %p208 = scmp.lt.s32.totalorder %s13, 3
      %p209 = pnand %p207, %p208
      %p210 = pneg %p209
      // Predicated region
      $region33: #{tpu_custom_call.1} parent=5 // pred_check
        _
      $region34: #{tpu_custom_call.1} parent=5 // pred_check_branch
        %212 = sbr.rel (%p209) target = $region36
      $region35: #{tpu_custom_call.1} parent=5 // pred_region
        %s213 = ssub.s32 %s13, 1
        %s214 = smul.u32 2, %s22
        %p215 = scmp.lt.s32.totalorder %s214, 3
        %s216 = scalar_select %p215, %s214, 3
        %s217 = smul.addr %s216, 4
        %s218 = scalar_lea.vmem %s0, %s217
        %p219 = pneg %p51
        %p220 = pneg %p48
        %s221 = smul.u32 2, %s22
        %p222 = scmp.lt.s32.totalorder %s221, 3
        %s223 = scalar_select %p222, %s221, 3
        %s224 = smul.addr %s223, 4
        %s225 = scalar_lea.vmem %s1, %s224
        %p226 = pneg %p77
        %p227 = pneg %p74
        %p228 = scmp.lt.s32.totalorder %s23, 0
        %s229 = scalar_select %p228, %s23, 0
        %s230 = smul.addr %s229, 4
        %s231 = scalar_lea.vmem %s2, %s230
        %p232 = pneg %p103
        %p233 = pneg %p100
        %p234 = scmp.lt.s32.totalorder %s23, 0
        %s235 = scalar_select %p234, %s23, 0
        %s236 = scalar_lea.vmem %s3, %s235
        %p237 = pneg %p129
        %p238 = pneg %p126
        %p239 = pneg %p157
        %p240 = pneg %p154
        %s241 = sand.u32 %s144, 1
        %s242 = scalar_lea.sflag [#allocation3], %s241
        %s243 = sand.u32 %s144, 1
        %s244 = smul.addr %s243, 16
        %s245 = scalar_lea.vmem [#allocation2], %s244
        %s246 = smul.u32 2, %s22
        %p247 = scmp.lt.s32.totalorder %s246, 3
        %s248 = scalar_select %p247, %s246, 3
        %s249 = smul.addr %s248, 4
        %s250 = scalar_lea.vmem %s0, %s249
        %s251 = smul.u32 2, %s22
        %s252 = smul.u32 2, %s22
        %p253 = scmp.lt.s32.totalorder %s252, 3
        %s254 = scalar_select %p253, %s252, 3
        %s255 = smul.addr %s254, 4
        %s256 = scalar_lea.vmem %s1, %s255
        %s257 = smul.u32 2, %s22
        %p258 = scmp.lt.s32.totalorder %s23, 0
        %s259 = scalar_select %p258, %s23, 0
        %s260 = smul.addr %s259, 4
        %s261 = scalar_lea.vmem %s2, %s260
        %p262 = scmp.lt.s32.totalorder %s23, 0
        %s263 = scalar_select %p262, %s23, 0
        %s264 = scalar_lea.vmem %s3, %s263
        %s265 = smul.u32 2, %s22
        %v267 = vld [vmem:[%s250] sm:$0xf]
        %v268 = vld [vmem:[%s250 + $0x4] sm:$0xf]
        %v269 = vld [vmem:[%s256] sm:$0xf]
        %v270 = vld [vmem:[%s256 + $0x4] sm:$0xf]
        %272 = vset.pattern.permute.xlu0 0
        %273 = vperm.xlu0 %272, %v269
        %v274 = vpop.permute.xlu0 %273
        %v277 = vunpack.c.l.s4 839922192
        %v278 = vunpack.c.0.s8 %v277
        %v279 = vperm.slane %v274, %v278
        %281 = vset.pattern.permute.xlu0 0
        %282 = vperm.xlu0 %281, %v270
        %v283 = vpop.permute.xlu0 %282
        %v286 = vunpack.c.l.s4 839922192
        %v287 = vunpack.c.0.s8 %v286
        %v288 = vperm.slane %v283, %v287
        %v289 = vunpack.c.l.bf16 %v267
        %v290 = vunpack.c.l.bf16 %v268
        %v291 = vunpack.c.l.bf16 %v279
        %v292 = vunpack.c.l.bf16 %v288
        %v293 = vmul.f32 %v289, %v291
        %v294 = vmul.f32 %v290, %v292
        %v295 = vpack.c.bf16 %v294, %v293
        %v296 = vld [vmem:[%s261] sm:$0xf]
        %v297 = vld [vmem:[%s264] sm:$0x1]
        %v299 = vperm.slane %v297, 0
        %vm301 = vcmask 64512
        %v303 = vsel %vm301, %v295, 0
        %vm305 = vcmask 1043456
        %v307 = vsel %vm305, %v296, 0
        %309 = vmatpush.bf16.msra.mxu0 0
        %310 = vmatpush.bf16.msra.mxu0 0
        %311 = vmatpush.bf16.msra.mxu0 0
        %312 = vmatpush.bf16.msra.mxu0 0
        %313 = vmatpush.bf16.msra.mxu0 0
        %314 = vmatpush.bf16.msra.mxu0 0
        %315 = vmatpush.bf16.msra.mxu0 0
        %316 = vmatpush.bf16.msra.mxu0 %v307
        %317 = vmatmul.bf16.gmra.mxu0 %v303
        %v318 = vpop.f32.mrf.mxu0
        %v319 = vadd.f32 %v299, %v318
        %v320 = vpop.f32.mrf.mxu0
        %v321 = vadd.f32 %v299, %v320
        %322 = vdwg.mxu0
        %v323 = vmax.f32 %v319, 0.0
        %v324 = vmax.f32 %v321, 0.0
        %325 = vst [vmem:[%s245] sm:$0xff] %v323
        %326 = vst [vmem:[%s245 + $0x8] sm:$0xff] %v324
        %s327 = sand.u32 %s144, 1
        %s328 = scalar_lea.sflag [#allocation3], %s327
        %s329 = sand.u32 %s144, 1
        %s330 = smul.addr %s329, 16
        %s331 = scalar_lea.vmem [#allocation2], %s330
        // Predicated region
        $region37: #{tpu_custom_call.1} parent=35 // pred_check
          %p332 = pneg %p154
        $region38: #{tpu_custom_call.1} parent=35 // pred_check_branch
          %334 = sbr.rel (%p332) target = $region40
        $region39: #{tpu_custom_call.1} parent=35 // pred_region
          %s335 = smul.u32 2, %s22
          %337 = vsyncadd %s328, 0
          %s338 = sadd.s32 %s23, %s335
          %s339 = smul.addr %s338, 8
          %s340 = scalar_lea.hbm %s4, %s339
          %s341 = sshll.u32 %s331, 4
          %s342 = int_to_ptr.vmem [resolvable:$true] %s341
          %s343 = sshll.u32 %s340, 4
          %s344 = int_to_ptr.hbm [resolvable:$true] %s343
          %349 = dma.vmem_to_hbm [thread:$0]  %s342, 256, %s344, %s328, 128, 128, 8
        $region40: #{tpu_custom_call.1} parent=35 // pred_fallthru
          _
      $region36: #{tpu_custom_call.1} parent=5 // pred_fallthru
        _
      %p350 = scmp.le.s32.totalorder 2, %s13
      // Predicated region
      $region41: #{tpu_custom_call.1} parent=5 // pred_check
        %p351 = pneg %p350
      $region42: #{tpu_custom_call.1} parent=5 // pred_check_branch
        %353 = sbr.rel (%p351) target = $region44
      $region43: #{tpu_custom_call.1} parent=5 // pred_region
        %s354 = ssub.s32 %s13, 2
        // Predicated region
        $region45: #{tpu_custom_call.1} parent=43 // pred_check
          %p355 = pneg %p160
        $region46: #{tpu_custom_call.1} parent=43 // pred_check_branch
          %357 = sbr.rel (%p355) target = $region48
        $region47: #{tpu_custom_call.1} parent=43 // pred_region
          %s358 = sand.u32 %s145, 1
          %s359 = scalar_lea.sflag [#allocation3], %s358
          %s360 = sand.u32 %s145, 1
          %s361 = smul.addr %s360, 16
          %s362 = scalar_lea.vmem [#allocation2], %s361
          %364 = dma.done %s359, 256
        $region48: #{tpu_custom_call.1} parent=43 // pred_fallthru
          _
      $region44: #{tpu_custom_call.1} parent=5 // pred_fallthru
        _
    $region6: #{tpu_custom_call.1} parent=1 // loop_footer
      %s17 = sadd.s32 1, %s13
    $region7: #{tpu_custom_call.1} parent=1 // loop_footer_branch
      %12 = sbr.rel target = $region3
    $region8: #{tpu_custom_call.1} parent=1 // loop_exit
      _
    %365 = vsyncpa [#allocation3], 1
    %s366 = scalar_lea.sflag [#allocation3], 1
    %367 = vsyncpa %s366, 1

</llo_original>
